<compile_context>
chip_gen: v7x
topology: tpu7x:2x2x1
jax: 0.10.0
libtpu: 0.0.40
codegen_flags: <defaults>
</compile_context>

<pallas_src>
import functools

import jax
import jax.numpy as jnp
from jax.experimental import pallas as pl
from jax.experimental.pallas import tpu as pltpu


# -----------------------------------------------------------------------------
# Fused kernel: K-tiled encoder matmul + cosine-similarity / temperature epilogue
#   x_all : (Br + Nc, K)  bf16   (reference rows first, then candidate rows)
#   w     : (K, Dp)       bf16   (Dp = D zero-padded to a multiple of 128)
#   b     : (1, Dp)       f32
#   inv_t : (1, 1)        f32    (1 / temperature, SMEM)
#   out   : (Br, G)       f32
# -----------------------------------------------------------------------------
def _fused_kernel(x_ref, w_ref, b_ref, invt_ref, o_ref, acc_ref,
                  *, n_ref_rows, n_groups, group_size):
    k = pl.program_id(0)

    @pl.when(k == 0)
    def _init():
        acc_ref[...] = jnp.zeros_like(acc_ref)

    # bf16 x bf16 -> f32 on the MXU, accumulated across K tiles.
    acc_ref[...] += jnp.dot(x_ref[...], w_ref[...],
                            preferred_element_type=jnp.float32)

    @pl.when(k == pl.num_programs(0) - 1)
    def _finalize():
        bias = b_ref[...]                      # (1, Dp) f32
        inv_t = invt_ref[0, 0]                 # hoisted 1/temperature scalar
        eps_sq = jnp.float32(1e-16)            # (torch cosine eps = 1e-8) ** 2

        r = acc_ref[pl.ds(0, n_ref_rows), :] + bias              # (B, Dp)
        r_sq = jnp.sum(r * r, axis=-1, keepdims=True)            # (B, 1)
        inv_rn = jax.lax.rsqrt(jnp.maximum(r_sq, eps_sq))        # EUP rsqrt

        cols = []
        for g in range(n_groups):              # static unroll, G is small
            start = n_ref_rows + g * group_size
            c = acc_ref[pl.ds(start, group_size), :] + bias      # (B, Dp)
            dot = jnp.sum(r * c, axis=-1, keepdims=True)         # (B, 1)
            c_sq = jnp.sum(c * c, axis=-1, keepdims=True)
            inv_cn = jax.lax.rsqrt(jnp.maximum(c_sq, eps_sq))
            cols.append(dot * inv_rn * inv_cn)                   # one mul chain
        o_ref[...] = jnp.concatenate(cols, axis=1) * inv_t       # (B, G)


def _pick_k_tile(k_dim):
    # Largest lane-aligned tile that divides K (v7x-safe; v5e/v6e have headroom
    # for larger tiles, but at these sizes the single-buffered cost is trivial).
    for tk in (512, 256, 128):
        if k_dim % tk == 0:
            return tk
    return k_dim  # small / irregular K: single block


# -----------------------------------------------------------------------------
# SymbolMatcher forward
# -----------------------------------------------------------------------------
def symbol_matcher_forward(reference, candidates, params):
    w, b, temperature = params["w"], params["b"], params["temperature"]

    br = reference.shape[0]
    nc = candidates.shape[0]

    if br == 1:
        # similarity: (1, Nc) — the single reference against every candidate.
        n_groups, group_size = nc, 1
        cand = candidates
    else:
        # similarity: (B, 4) — reference b against its contiguous group of 4.
        if nc % 4 != 0 or nc // 4 != br:
            raise ValueError(
                "grouped branch expects candidates.shape[0] == 4 * reference.shape[0]")
        n_groups, group_size = 4, br
        # Re-order candidates group-offset-major so the kernel epilogue only
        # needs contiguous row slices: new row g*B + b  <-  original row b*4 + g.
        cand = candidates.reshape(br, 4, *candidates.shape[1:])
        cand = jnp.swapaxes(cand, 0, 1).reshape(nc, *candidates.shape[1:])

    # Channels-first flatten (== torch .view(N, -1)); fuse both encodes into one
    # matmul by concatenating along N; bf16 inputs for the MXU.
    x_all = jnp.concatenate(
        [reference.reshape(br, -1), cand.reshape(nc, -1)], axis=0
    ).astype(jnp.bfloat16)
    n_total, k_dim = x_all.shape
    d = w.shape[1]

    # Zero-pad embedding dim to a lane-dense multiple of 128 (exact zeros, so
    # dots and norms — hence the cosine similarity — are unchanged).
    d_pad = 128 * pl.cdiv(d, 128)
    w_pad = jnp.zeros((k_dim, d_pad), jnp.bfloat16).at[:, :d].set(
        w.astype(jnp.bfloat16))
    b_pad = jnp.zeros((1, d_pad), jnp.float32).at[:, :d].set(
        jnp.asarray(b, jnp.float32).reshape(1, -1))

    inv_t = (1.0 / jnp.asarray(temperature, jnp.float32)).reshape(1, 1)

    tk = _pick_k_tile(k_dim)
    grid = (k_dim // tk,)

    kernel = functools.partial(
        _fused_kernel, n_ref_rows=br, n_groups=n_groups, group_size=group_size)

    return pl.pallas_call(
        kernel,
        out_shape=jax.ShapeDtypeStruct((br, n_groups), jnp.float32),
        grid=grid,
        in_specs=[
            pl.BlockSpec((n_total, tk), lambda ki: (0, ki)),    # x K-tile
            pl.BlockSpec((tk, d_pad), lambda ki: (ki, 0)),      # w K-tile
            pl.BlockSpec((1, d_pad), lambda ki: (0, 0)),        # bias (resident)
            pl.BlockSpec(memory_space=pltpu.MemorySpace.SMEM),  # 1/temperature
        ],
        out_specs=pl.BlockSpec((br, n_groups), lambda ki: (0, 0)),
        scratch_shapes=[pltpu.VMEM((n_total, d_pad), jnp.float32)],
        compiler_params=pltpu.CompilerParams(
            dimension_semantics=("arbitrary",)),   # K is a reduction axis
        cost_estimate=pl.CostEstimate(
            flops=2 * n_total * k_dim * d_pad,
            transcendentals=2 * n_total,
            bytes_accessed=(x_all.size * 2 + w_pad.size * 2
                            + b_pad.size * 4 + br * n_groups * 4 + 4)),
    )(x_all, w_pad, b_pad, inv_t)


# Pure-JAX reference (same bf16-matmul / f32-accumulate numerics) for sanity.
def _reference_forward(reference, candidates, params):
    w, b, t = params["w"], params["b"], params["temperature"]

    def enc(x):
        xf = x.reshape(x.shape[0], -1).astype(jnp.bfloat16)
        return jnp.dot(xf, w.astype(jnp.bfloat16),
                       preferred_element_type=jnp.float32) + jnp.asarray(
                           b, jnp.float32).reshape(1, -1)

    re, ce = enc(reference), enc(candidates)
    eps = 1e-8
    if reference.shape[0] == 1:
        ce3 = ce[None]                                    # (1, Nc, D)
    else:
        ce3 = ce.reshape(candidates.shape[0] // 4, 4, -1)  # (B, 4, D)
    dot = jnp.sum(re[:, None, :] * ce3, axis=-1)
    rn = jnp.maximum(jnp.linalg.norm(re, axis=-1, keepdims=True), eps)
    cn = jnp.maximum(jnp.linalg.norm(ce3, axis=-1), eps)
    return dot / (rn * cn) / t


if __name__ == "__main__":
    key = jax.random.PRNGKey(0)
    k_ref, k_cand, k_w, k_single = jax.random.split(key, 4)

    # Small shapes: batch B=2, channels=4, spatial=16x16, embedding dim D=32.
    B, C, H, W, D = 2, 4, 16, 16, 32
    K = C * H * W

    reference = jax.random.normal(k_ref, (B, C, H, W), dtype=jnp.float32)
    candidates = jax.random.normal(k_cand, (4 * B, C, H, W), dtype=jnp.float32)

    params = {
        "w": jax.random.normal(k_w, (K, D), dtype=jnp.float32) * 0.02,
        "b": jnp.zeros((1, D), dtype=jnp.float32),
        "temperature": jnp.float32(0.07),   # nn.Parameter init = 0.07
    }

    # Grouped branch: similarity (B, 4)
    out = jax.block_until_ready(symbol_matcher_forward(reference, candidates, params))
    ref_out = _reference_forward(reference, candidates, params)
    assert out.shape == (B, 4), out.shape
    assert jnp.allclose(out, ref_out, atol=1e-3, rtol=1e-3), (out, ref_out)

    # Single-reference branch: similarity (1, Nc)
    ref1 = jax.random.normal(k_single, (1, C, H, W), dtype=jnp.float32)
    out1 = jax.block_until_ready(symbol_matcher_forward(ref1, candidates, params))
    ref_out1 = _reference_forward(ref1, candidates, params)
    assert out1.shape == (1, 4 * B), out1.shape
    assert jnp.allclose(out1, ref_out1, atol=1e-3, rtol=1e-3), (out1, ref_out1)

    print("KERNEL_OK")
</pallas_src>

<mosaic_0001>
module attributes {stable_mosaic.version = 11 : i64} {
  func.func @_fused_kernel(%arg0: i32, %arg1: memref<10x512xbf16, #tpu.memory_space<vmem>>, %arg2: memref<512x128xbf16, #tpu.memory_space<vmem>>, %arg3: memref<1x128xf32, #tpu.memory_space<vmem>>, %arg4: memref<1x1xf32, #tpu.memory_space<smem>>, %arg5: memref<2x4xf32, #tpu.memory_space<vmem>>, %arg6: memref<10x128xf32, #tpu.memory_space<vmem>>) attributes {dimension_semantics = [#tpu.dimension_semantics<arbitrary>], iteration_bounds = array<i64: 2>, scalar_prefetch = 0 : i64, scratch_operands = 1 : i64, tpu.core_type = #tpu.core_type<tc>, window_params = [{transform_indices = @transform_0, window_bounds = array<i64: 10, 512>}, {transform_indices = @transform_1, window_bounds = array<i64: 512, 128>}, {pipeline_mode = #tpu.pipeline_mode<synchronous>, transform_indices = @transform_2, window_bounds = array<i64: 1, 128>}, {transform_indices = @transform_3, window_bounds = array<i64: 1, 1>}, {pipeline_mode = #tpu.pipeline_mode<synchronous>, transform_indices = @transform_4, window_bounds = array<i64: 2, 4>}]} {
    %c0_i32 = arith.constant 0 : i32
    %0 = arith.cmpi eq, %arg0, %c0_i32 : i32
    %1 = arith.extui %0 : i1 to i32
    %c0_i32_0 = arith.constant 0 : i32
    %2 = arith.cmpi ne, %1, %c0_i32_0 : i32
    scf.if %2 {
      %cst_9 = arith.constant 0.000000e+00 : f32
      %12 = vector.broadcast %cst_9 : f32 to vector<10x128xf32>
      %c0_10 = arith.constant 0 : index
      %c0_11 = arith.constant 0 : index
      %13 = vector.load %arg6[%c0_10, %c0_11] : memref<10x128xf32, #tpu.memory_space<vmem>>, vector<10x128xf32>
      tpu.vector_store %arg6[%c0_10, %c0_11], %12 {strides = array<i32>} : memref<10x128xf32, #tpu.memory_space<vmem>>, vector<10x128xf32>,
    } else {
    }
    %c0 = arith.constant 0 : index
    %c0_1 = arith.constant 0 : index
    %3 = vector.load %arg6[%c0, %c0_1] : memref<10x128xf32, #tpu.memory_space<vmem>>, vector<10x128xf32>
    %c0_2 = arith.constant 0 : index
    %c0_3 = arith.constant 0 : index
    %4 = vector.load %arg1[%c0_2, %c0_3] : memref<10x512xbf16, #tpu.memory_space<vmem>>, vector<10x512xbf16>
    %c0_4 = arith.constant 0 : index
    %c0_5 = arith.constant 0 : index
    %5 = vector.load %arg2[%c0_4, %c0_5] : memref<512x128xbf16, #tpu.memory_space<vmem>>, vector<512x128xbf16>
    %cst = arith.constant dense<0.000000e+00> : vector<10x128xf32>
    %6 = tpu.matmul %4, %5, %cst {dimension_numbers = #tpu.dot_dimension_numbers<[1], [0], [0], [1], [0, 0, 1, 1], [], []>} : vector<10x512xbf16>, vector<512x128xbf16>, vector<10x128xf32> -> vector<10x128xf32>
    %7 = arith.addf %3, %6 : vector<10x128xf32>
    %c0_6 = arith.constant 0 : index
    %c0_7 = arith.constant 0 : index
    %8 = vector.load %arg6[%c0_6, %c0_7] : memref<10x128xf32, #tpu.memory_space<vmem>>, vector<10x128xf32>
    tpu.vector_store %arg6[%c0_6, %c0_7], %7 {strides = array<i32>} : memref<10x128xf32, #tpu.memory_space<vmem>>, vector<10x128xf32>,
    %c1_i32 = arith.constant 1 : i32
    %9 = arith.cmpi eq, %arg0, %c1_i32 : i32
    %10 = arith.extui %9 : i1 to i32
    %c0_i32_8 = arith.constant 0 : i32
    %11 = arith.cmpi ne, %10, %c0_i32_8 : i32
    scf.if %11 {
      %c0_9 = arith.constant 0 : index
      %c0_10 = arith.constant 0 : index
      %12 = vector.load %arg3[%c0_9, %c0_10] : memref<1x128xf32, #tpu.memory_space<vmem>>, vector<1x128xf32>
      %c0_11 = arith.constant 0 : index
      %c0_12 = arith.constant 0 : index
      %13 = memref.load %arg4[%c0_11, %c0_12] : memref<1x1xf32, #tpu.memory_space<smem>>
      %c0_13 = arith.constant 0 : index
      %c0_14 = arith.constant 0 : index
      %14 = vector.load %arg6[%c0_13, %c0_14] : memref<10x128xf32, #tpu.memory_space<vmem>>, vector<2x128xf32>
      %15 = vector.broadcast %12 : vector<1x128xf32> to vector<2x128xf32>
      %16 = arith.addf %14, %15 : vector<2x128xf32>
      %17 = arith.mulf %16, %16 : vector<2x128xf32>
      %cst_15 = arith.constant dense<0.000000e+00> : vector<2xf32>
      %18 = vector.multi_reduction <add>, %17, %cst_15 [1] : vector<2x128xf32> to vector<2xf32>
      %19 = vector.shape_cast %18 : vector<2xf32> to vector<2x1xf32>
      %cst_16 = arith.constant 1.000000e-16 : f32
      %20 = vector.broadcast %cst_16 : f32 to vector<2x1xf32>
      %21 = arith.maximumf %19, %20 : vector<2x1xf32>
      %22 = math.rsqrt %21 : vector<2x1xf32>
      %c2 = arith.constant 2 : index
      %c0_17 = arith.constant 0 : index
      %23 = vector.load %arg6[%c2, %c0_17] : memref<10x128xf32, #tpu.memory_space<vmem>>, vector<2x128xf32>
      %24 = vector.broadcast %12 : vector<1x128xf32> to vector<2x128xf32>
      %25 = arith.addf %23, %24 : vector<2x128xf32>
      %26 = arith.mulf %16, %25 : vector<2x128xf32>
      %cst_18 = arith.constant dense<0.000000e+00> : vector<2xf32>
      %27 = vector.multi_reduction <add>, %26, %cst_18 [1] : vector<2x128xf32> to vector<2xf32>
      %28 = vector.shape_cast %27 : vector<2xf32> to vector<2x1xf32>
      %29 = arith.mulf %25, %25 : vector<2x128xf32>
      %cst_19 = arith.constant dense<0.000000e+00> : vector<2xf32>
      %30 = vector.multi_reduction <add>, %29, %cst_19 [1] : vector<2x128xf32> to vector<2xf32>
      %31 = vector.shape_cast %30 : vector<2xf32> to vector<2x1xf32>
      %cst_20 = arith.constant 1.000000e-16 : f32
      %32 = vector.broadcast %cst_20 : f32 to vector<2x1xf32>
      %33 = arith.maximumf %31, %32 : vector<2x1xf32>
      %34 = math.rsqrt %33 : vector<2x1xf32>
      %35 = arith.mulf %28, %22 : vector<2x1xf32>
      %36 = arith.mulf %35, %34 : vector<2x1xf32>
      %c4 = arith.constant 4 : index
      %c0_21 = arith.constant 0 : index
      %37 = vector.load %arg6[%c4, %c0_21] : memref<10x128xf32, #tpu.memory_space<vmem>>, vector<2x128xf32>
      %38 = vector.broadcast %12 : vector<1x128xf32> to vector<2x128xf32>
      %39 = arith.addf %37, %38 : vector<2x128xf32>
      %40 = arith.mulf %16, %39 : vector<2x128xf32>
      %cst_22 = arith.constant dense<0.000000e+00> : vector<2xf32>
      %41 = vector.multi_reduction <add>, %40, %cst_22 [1] : vector<2x128xf32> to vector<2xf32>
      %42 = vector.shape_cast %41 : vector<2xf32> to vector<2x1xf32>
      %43 = arith.mulf %39, %39 : vector<2x128xf32>
      %cst_23 = arith.constant dense<0.000000e+00> : vector<2xf32>
      %44 = vector.multi_reduction <add>, %43, %cst_23 [1] : vector<2x128xf32> to vector<2xf32>
      %45 = vector.shape_cast %44 : vector<2xf32> to vector<2x1xf32>
      %cst_24 = arith.constant 1.000000e-16 : f32
      %46 = vector.broadcast %cst_24 : f32 to vector<2x1xf32>
      %47 = arith.maximumf %45, %46 : vector<2x1xf32>
      %48 = math.rsqrt %47 : vector<2x1xf32>
      %49 = arith.mulf %42, %22 : vector<2x1xf32>
      %50 = arith.mulf %49, %48 : vector<2x1xf32>
      %c6 = arith.constant 6 : index
      %c0_25 = arith.constant 0 : index
      %51 = vector.load %arg6[%c6, %c0_25] : memref<10x128xf32, #tpu.memory_space<vmem>>, vector<2x128xf32>
      %52 = vector.broadcast %12 : vector<1x128xf32> to vector<2x128xf32>
      %53 = arith.addf %51, %52 : vector<2x128xf32>
      %54 = arith.mulf %16, %53 : vector<2x128xf32>
      %cst_26 = arith.constant dense<0.000000e+00> : vector<2xf32>
      %55 = vector.multi_reduction <add>, %54, %cst_26 [1] : vector<2x128xf32> to vector<2xf32>
      %56 = vector.shape_cast %55 : vector<2xf32> to vector<2x1xf32>
      %57 = arith.mulf %53, %53 : vector<2x128xf32>
      %cst_27 = arith.constant dense<0.000000e+00> : vector<2xf32>
      %58 = vector.multi_reduction <add>, %57, %cst_27 [1] : vector<2x128xf32> to vector<2xf32>
      %59 = vector.shape_cast %58 : vector<2xf32> to vector<2x1xf32>
      %cst_28 = arith.constant 1.000000e-16 : f32
      %60 = vector.broadcast %cst_28 : f32 to vector<2x1xf32>
      %61 = arith.maximumf %59, %60 : vector<2x1xf32>
      %62 = math.rsqrt %61 : vector<2x1xf32>
      %63 = arith.mulf %56, %22 : vector<2x1xf32>
      %64 = arith.mulf %63, %62 : vector<2x1xf32>
      %c8 = arith.constant 8 : index
      %c0_29 = arith.constant 0 : index
      %65 = vector.load %arg6[%c8, %c0_29] : memref<10x128xf32, #tpu.memory_space<vmem>>, vector<2x128xf32>
      %66 = vector.broadcast %12 : vector<1x128xf32> to vector<2x128xf32>
      %67 = arith.addf %65, %66 : vector<2x128xf32>
      %68 = arith.mulf %16, %67 : vector<2x128xf32>
      %cst_30 = arith.constant dense<0.000000e+00> : vector<2xf32>
      %69 = vector.multi_reduction <add>, %68, %cst_30 [1] : vector<2x128xf32> to vector<2xf32>
      %70 = vector.shape_cast %69 : vector<2xf32> to vector<2x1xf32>
      %71 = arith.mulf %67, %67 : vector<2x128xf32>
      %cst_31 = arith.constant dense<0.000000e+00> : vector<2xf32>
      %72 = vector.multi_reduction <add>, %71, %cst_31 [1] : vector<2x128xf32> to vector<2xf32>
      %73 = vector.shape_cast %72 : vector<2xf32> to vector<2x1xf32>
      %cst_32 = arith.constant 1.000000e-16 : f32
      %74 = vector.broadcast %cst_32 : f32 to vector<2x1xf32>
      %75 = arith.maximumf %73, %74 : vector<2x1xf32>
      %76 = math.rsqrt %75 : vector<2x1xf32>
      %77 = arith.mulf %70, %22 : vector<2x1xf32>
      %78 = arith.mulf %77, %76 : vector<2x1xf32>
      %79 = tpu.concatenate %36, %50, %64, %78 in 1 : vector<2x1xf32>, vector<2x1xf32>, vector<2x1xf32>, vector<2x1xf32> -> vector<2x4xf32>
      %80 = vector.broadcast %13 : f32 to vector<2x4xf32>
      %81 = arith.mulf %79, %80 : vector<2x4xf32>
      %c0_33 = arith.constant 0 : index
      %c0_34 = arith.constant 0 : index
      %82 = vector.load %arg5[%c0_33, %c0_34] : memref<2x4xf32, #tpu.memory_space<vmem>>, vector<2x4xf32>
      tpu.vector_store %arg5[%c0_33, %c0_34], %81 {strides = array<i32>} : memref<2x4xf32, #tpu.memory_space<vmem>>, vector<2x4xf32>,
    } else {
    }
    return
  }
  func.func @transform_0(%arg0: i32) -> (i32, i32) {
    %c0_i32 = arith.constant 0 : i32
    %c0_i32_0 = arith.constant 0 : i32
    return %c0_i32, %arg0 : i32, i32
  }
  func.func @transform_1(%arg0: i32) -> (i32, i32) {
    %c0_i32 = arith.constant 0 : i32
    %c0_i32_0 = arith.constant 0 : i32
    return %arg0, %c0_i32 : i32, i32
  }
  func.func @transform_2(%arg0: i32) -> (i32, i32) {
    %c0_i32 = arith.constant 0 : i32
    %c0_i32_0 = arith.constant 0 : i32
    %c0_i32_1 = arith.constant 0 : i32
    return %c0_i32, %c0_i32_0 : i32, i32
  }
  func.func @transform_3(%arg0: i32) -> (i32, i32) {
    %c0_i32 = arith.constant 0 : i32
    %c0_i32_0 = arith.constant 0 : i32
    %c0_i32_1 = arith.constant 0 : i32
    return %c0_i32, %c0_i32_0 : i32, i32
  }
  func.func @transform_4(%arg0: i32) -> (i32, i32) {
    %c0_i32 = arith.constant 0 : i32
    %c0_i32_0 = arith.constant 0 : i32
    %c0_i32_1 = arith.constant 0 : i32
    return %c0_i32, %c0_i32_0 : i32, i32
  }
}

</mosaic_0001>

<llo_original>
// kernel: tpu_custom_call.1
$region0: #{tpu_custom_call.1}
  #allocation0 [shape = 'u32[]', space=smem, size = 0x4, offset = 0x4, fixed_abs, tag = 'smem constant byte address 0x4 - core index']
  #allocation1 [shape = 'u32[144,128]{1,0:T(1,128)}', space=vmem, size = 0x12000, scoped, tag = 'internal scratch']
  #allocation2 [shape = 'f32[10,128]{1,0:T(8,128)}', space=vmem, size = 0x2000, scoped, tag = 'scratch operand']
  #allocation3 [shape = 'f32[1,1]{1,0:T(1,128)S(6)}', space=smem, size = 0x200, scoped, tag = 'scoped memory for tpu_custom_call.1']
  %s0 = inlined_call_operand.hbm [shape: bf16[10,1024], index: 0, kind: input, shape index: {}]
  %s1 = inlined_call_operand.hbm [shape: bf16[1024,128], index: 1, kind: input, shape index: {}]
  %s2 = inlined_call_operand.vmem [shape: f32[1,128], index: 2, kind: input, shape index: {}]
  %s3 = inlined_call_operand.<no memory space> [shape: f32[1,1], index: 3, kind: input, shape index: {}]
  %s4 = inlined_call_operand.hbm [shape: f32[2,4], index: 4, kind: output, shape index: {}]
  %s5 = sld [smem:[#allocation0]]
  $region65: #{tpu_custom_call.1} parent=0
    _
  %s7 = ssub.s32 1, %s5
  %s8 = scalar_select 0, %s7, %s5
  %9 = sst [smem:[#allocation3]] %s3
  $region1: #{tpu_custom_call.1} parent=0
    #allocation4 [shape = 'u8[32768]{0}', space=vmem, size = 0x8000, scoped, tag = 'input window, operand 0']
    #allocation5 [shape = 's32[2]{0}', space=sflag, size = 0x8, scoped, tag = 'scoped memory for tpu_custom_call.1']
    #allocation6 [shape = 's32[2]{0}', space=sflag, size = 0x8, scoped, tag = 'scoped memory for tpu_custom_call.1']
    #allocation7 [shape = 'u8[262144]{0}', space=vmem, size = 0x40000, scoped, tag = 'input window, operand 1']
    #allocation8 [shape = 's32[2]{0}', space=sflag, size = 0x8, scoped, tag = 'scoped memory for tpu_custom_call.1']
    #allocation9 [shape = 'u8[1024]{0}', space=vmem, size = 0x400, scoped, tag = 'output window, operand 0, single buffered']
    %10 = vsyncpa [#allocation5], 0
    %s11 = scalar_lea.sflag [#allocation5], 1
    %12 = vsyncpa %s11, 0
    %13 = vsyncpa [#allocation8], 0
    %s14 = scalar_lea.sflag [#allocation8], 1
    %15 = vsyncpa %s14, 0
    %16 = vsyncpa [#allocation6], 0
    loop: start=0, step=1, limit=4
    $region2: #{tpu_custom_call.1} parent=1 // loop_pre_header
      _
    $region3: #{tpu_custom_call.1} parent=1 // loop_header
      %s18 = sphi 0, %s22
      %p19 = scmp.ge.s32.totalorder %s18, 4
      %s28 = sphi 0, %s30
      %s31 = sphi 0, %s28
      %s32 = sphi 0, %s31
      %s48 = sphi 0, %s32
      %s54 = sphi 0, %s56
      %s57 = sphi 0, %s54
      %s58 = sphi 0, %s57
      %s74 = sphi 0, %s58
      %s78 = sphi 0, %s78
      %s80 = sphi 0, %s78
      %s81 = sphi 0, %s80
      %s95 = sphi 0, %s81
      %s99 = sphi 0, %s99
      %s101 = sphi 0, %s99
      %s102 = sphi 0, %s101
      %s116 = sphi 0, %s102
      %s120 = sphi 0, %s120
      %s122 = sphi 0, %s120
      %s123 = sphi 0, %s122
      %s137 = sphi 0, %s123
    $region4: #{tpu_custom_call.1} parent=1 // loop_header_branch
      %21 = sbr.rel (%p19) target = $region8
    $region5: #{tpu_custom_call.1} parent=1 // loop_body
      %s23 = ssub.s32 %s18, 1
      %s24 = ssub.s32 %s18, 2
      %s25 = sadd.s32 %s18, 1
      %s26 = ssub.s32 %s18, %s25
      %p27 = scmp.eq.s32.totalorder %s26, 0
      %s29 = sadd.s32 %s28, 1
      %s30 = scalar_select %p27, %s28, %s29
      %p33 = pneg %p27
      %p34 = scmp.eq.s32.totalorder %s18, 1
      %p35 = por %p33, %p34
      %p36 = scmp.ne.s32.totalorder %s28, %s31
      %p37 = scmp.eq.s32.totalorder %s18, 0
      %p38 = por %p36, %p37
      %p39 = scmp.ne.s32.totalorder %s28, %s31
      %p40 = scmp.eq.s32.totalorder %s23, 1
      %p41 = por %p39, %p40
      %p42 = scmp.ne.s32.totalorder %s31, %s32
      %p43 = scmp.eq.s32.totalorder %s23, 0
      %p44 = por %p42, %p43
      %p45 = scmp.ne.s32.totalorder %s31, %s32
      %p46 = scmp.eq.s32.totalorder %s24, 1
      %p47 = por %p45, %p46
      %p49 = scmp.ne.s32.totalorder %s32, %s48
      %p50 = scmp.eq.s32.totalorder %s24, 0
      %p51 = por %p49, %p50
      %s52 = ssub.s32 %s18, %s25
      %p53 = scmp.eq.s32.totalorder %s52, 0
      %s55 = sadd.s32 %s54, 1
      %s56 = scalar_select %p53, %s54, %s55
      %p59 = pneg %p53
      %p60 = scmp.eq.s32.totalorder %s18, 1
      %p61 = por %p59, %p60
      %p62 = scmp.ne.s32.totalorder %s54, %s57
      %p63 = scmp.eq.s32.totalorder %s18, 0
      %p64 = por %p62, %p63
      %p65 = scmp.ne.s32.totalorder %s54, %s57
      %p66 = scmp.eq.s32.totalorder %s23, 1
      %p67 = por %p65, %p66
      %p68 = scmp.ne.s32.totalorder %s57, %s58
      %p69 = scmp.eq.s32.totalorder %s23, 0
      %p70 = por %p68, %p69
      %p71 = scmp.ne.s32.totalorder %s57, %s58
      %p72 = scmp.eq.s32.totalorder %s24, 1
      %p73 = por %p71, %p72
      %p75 = scmp.ne.s32.totalorder %s58, %s74
      %p76 = scmp.eq.s32.totalorder %s24, 0
      %p77 = por %p75, %p76
      %s79 = sadd.s32 %s78, 1
      %p82 = scmp.eq.s32.totalorder %s18, 1
      %p83 = scmp.ne.s32.totalorder %s78, %s80
      %p84 = scmp.eq.s32.totalorder %s18, 0
      %p85 = por %p83, %p84
      %p86 = scmp.ne.s32.totalorder %s78, %s80
      %p87 = scmp.eq.s32.totalorder %s23, 1
      %p88 = por %p86, %p87
      %p89 = scmp.ne.s32.totalorder %s80, %s81
      %p90 = scmp.eq.s32.totalorder %s23, 0
      %p91 = por %p89, %p90
      %p92 = scmp.ne.s32.totalorder %s80, %s81
      %p93 = scmp.eq.s32.totalorder %s24, 1
      %p94 = por %p92, %p93
      %p96 = scmp.ne.s32.totalorder %s81, %s95
      %p97 = scmp.eq.s32.totalorder %s24, 0
      %p98 = por %p96, %p97
      %s100 = sadd.s32 %s99, 1
      %p103 = scmp.eq.s32.totalorder %s18, 1
      %p104 = scmp.ne.s32.totalorder %s99, %s101
      %p105 = scmp.eq.s32.totalorder %s18, 0
      %p106 = por %p104, %p105
      %p107 = scmp.ne.s32.totalorder %s99, %s101
      %p108 = scmp.eq.s32.totalorder %s23, 1
      %p109 = por %p107, %p108
      %p110 = scmp.ne.s32.totalorder %s101, %s102
      %p111 = scmp.eq.s32.totalorder %s23, 0
      %p112 = por %p110, %p111
      %p113 = scmp.ne.s32.totalorder %s101, %s102
      %p114 = scmp.eq.s32.totalorder %s24, 1
      %p115 = por %p113, %p114
      %p117 = scmp.ne.s32.totalorder %s102, %s116
      %p118 = scmp.eq.s32.totalorder %s24, 0
      %p119 = por %p117, %p118
      %s121 = sadd.s32 %s120, 1
      %p124 = scmp.eq.s32.totalorder %s18, 1
      %p125 = scmp.ne.s32.totalorder %s120, %s122
      %p126 = scmp.eq.s32.totalorder %s18, 0
      %p127 = por %p125, %p126
      %p128 = scmp.ne.s32.totalorder %s120, %s122
      %p129 = scmp.eq.s32.totalorder %s23, 1
      %p130 = por %p128, %p129
      %p131 = scmp.ne.s32.totalorder %s122, %s123
      %p132 = scmp.eq.s32.totalorder %s23, 0
      %p133 = por %p131, %p132
      %p134 = scmp.ne.s32.totalorder %s122, %s123
      %p135 = scmp.eq.s32.totalorder %s24, 1
      %p136 = por %p134, %p135
      %p138 = scmp.ne.s32.totalorder %s123, %s137
      %p139 = scmp.eq.s32.totalorder %s24, 0
      %p140 = por %p138, %p139
      %p141 = scmp.le.s32.totalorder 1, %s18
      %p142 = scmp.lt.s32.totalorder %s18, 3
      %p143 = pnand %p141, %p142
      %p144 = pneg %p143
      // Predicated region
      $region9: #{tpu_custom_call.1} parent=5 // pred_check
        _
      $region10: #{tpu_custom_call.1} parent=5 // pred_check_branch
        %146 = sbr.rel (%p143) target = $region12
      $region11: #{tpu_custom_call.1} parent=5 // pred_region
        %s147 = ssub.s32 %s18, 1
        // Predicated region
        $region13: #{tpu_custom_call.1} parent=11 // pred_check
          %p148 = pneg %p91
        $region14: #{tpu_custom_call.1} parent=11 // pred_check_branch
          %150 = sbr.rel (%p148) target = $region16
        $region15: #{tpu_custom_call.1} parent=11 // pred_region
          _
        $region16: #{tpu_custom_call.1} parent=11 // pred_fallthru
          _
        // Predicated region
        $region17: #{tpu_custom_call.1} parent=11 // pred_check
          %p151 = pneg %p112
        $region18: #{tpu_custom_call.1} parent=11 // pred_check_branch
          %153 = sbr.rel (%p151) target = $region20
        $region19: #{tpu_custom_call.1} parent=11 // pred_region
          _
        $region20: #{tpu_custom_call.1} parent=11 // pred_fallthru
          _
      $region12: #{tpu_custom_call.1} parent=5 // pred_fallthru
        _
      %p154 = scmp.lt.s32.totalorder %s18, 2
      // Predicated region
      $region21: #{tpu_custom_call.1} parent=5 // pred_check
        %p155 = pneg %p154
      $region22: #{tpu_custom_call.1} parent=5 // pred_check_branch
        %157 = sbr.rel (%p155) target = $region24
      $region23: #{tpu_custom_call.1} parent=5 // pred_region
        // Predicated region
        $region25: #{tpu_custom_call.1} parent=23 // pred_check
          %p158 = pneg %p38
        $region26: #{tpu_custom_call.1} parent=23 // pred_check_branch
          %160 = sbr.rel (%p158) target = $region28
        $region27: #{tpu_custom_call.1} parent=23 // pred_region
          %s161 = sand.u32 %s28, 1
          %s162 = scalar_lea.sflag [#allocation5], %s161
          %s163 = sand.u32 %s28, 1
          %s164 = smul.addr %s163, 32
          %s165 = scalar_lea.vmem [#allocation4], %s164
          %s166 = smul.u32 4, %s18
          %s168 = ssub.s32 512, 512
          %169 = vsyncadd %s162, %s168
          %s170 = smul.addr %s166, 64
          %s171 = scalar_lea.hbm %s0, %s170
          %s172 = sshll.u32 %s165, 4
          %s173 = int_to_ptr.vmem [resolvable:$true] %s172
          %178 = dma.hbm_to_vmem [thread:$0]  %s171, 512, %s173, %s162, 512, 256, 16
        $region28: #{tpu_custom_call.1} parent=23 // pred_fallthru
          _
        // Predicated region
        $region29: #{tpu_custom_call.1} parent=23 // pred_check
          %p179 = pneg %p64
        $region30: #{tpu_custom_call.1} parent=23 // pred_check_branch
          %181 = sbr.rel (%p179) target = $region32
        $region31: #{tpu_custom_call.1} parent=23 // pred_region
          %s182 = sand.u32 %s54, 1
          %s183 = scalar_lea.sflag [#allocation8], %s182
          %s184 = sand.u32 %s54, 1
          %s185 = smul.addr %s184, 256
          %s186 = scalar_lea.vmem [#allocation7], %s185
          %s187 = smul.u32 64, %s18
          %s189 = ssub.s32 4096, 4096
          %190 = vsyncadd %s183, %s189
          %s191 = smul.addr %s187, 64
          %s192 = scalar_lea.hbm %s1, %s191
          %s193 = sshll.u32 %s186, 4
          %s194 = int_to_ptr.vmem [resolvable:$true] %s193
          %199 = dma.hbm_to_vmem [thread:$0]  %s192, 4096, %s194, %s183, 64, 64, 4
        $region32: #{tpu_custom_call.1} parent=23 // pred_fallthru
          _
      $region24: #{tpu_custom_call.1} parent=5 // pred_fallthru
        _
      %p200 = scmp.le.s32.totalorder 1, %s18
      %p201 = scmp.lt.s32.totalorder %s18, 3
      %p202 = pnand %p200, %p201
      %p203 = pneg %p202
      // Predicated region
      $region33: #{tpu_custom_call.1} parent=5 // pred_check
        _
      $region34: #{tpu_custom_call.1} parent=5 // pred_check_branch
        %205 = sbr.rel (%p202) target = $region36
      $region35: #{tpu_custom_call.1} parent=5 // pred_region
        %s206 = ssub.s32 %s18, 1
        %s207 = sand.u32 %s31, 1
        %s208 = scalar_lea.sflag [#allocation5], %s207
        %s209 = sand.u32 %s31, 1
        %s210 = smul.addr %s209, 32
        %s211 = scalar_lea.vmem [#allocation4], %s210
        // Predicated region
        $region37: #{tpu_custom_call.1} parent=35 // pred_check
          %p212 = pneg %p44
        $region38: #{tpu_custom_call.1} parent=35 // pred_check_branch
          %214 = sbr.rel (%p212) target = $region40
        $region39: #{tpu_custom_call.1} parent=35 // pred_region
          %215 = dma.done %s208, 512
        $region40: #{tpu_custom_call.1} parent=35 // pred_fallthru
          _
        %s216 = sand.u32 %s57, 1
        %s217 = scalar_lea.sflag [#allocation8], %s216
        %s218 = sand.u32 %s57, 1
        %s219 = smul.addr %s218, 256
        %s220 = scalar_lea.vmem [#allocation7], %s219
        // Predicated region
        $region41: #{tpu_custom_call.1} parent=35 // pred_check
          %p221 = pneg %p70
        $region42: #{tpu_custom_call.1} parent=35 // pred_check_branch
          %223 = sbr.rel (%p221) target = $region44
        $region43: #{tpu_custom_call.1} parent=35 // pred_region
          %224 = dma.done %s217, 4096
        $region44: #{tpu_custom_call.1} parent=35 // pred_fallthru
          _
        %s225 = sand.u32 %s31, 1
        %s226 = scalar_lea.sflag [#allocation5], %s225
        %s227 = sand.u32 %s31, 1
        %s228 = smul.addr %s227, 32
        %s229 = scalar_lea.vmem [#allocation4], %s228
        %p230 = pneg %p44
        %p231 = pneg %p41
        %s232 = sand.u32 %s57, 1
        %s233 = scalar_lea.sflag [#allocation8], %s232
        %s234 = sand.u32 %s57, 1
        %s235 = smul.addr %s234, 256
        %s236 = scalar_lea.vmem [#allocation7], %s235
        %p237 = pneg %p70
        %p238 = pneg %p67
        %p239 = pneg %p91
        %p240 = pneg %p88
        %p241 = pneg %p112
        %p242 = pneg %p109
        %p243 = pneg %p133
        %p244 = pneg %p130
        %s245 = smul.u32 4, %s23
        %s246 = smul.u32 64, %s23
        %p248 = scmp.eq.s32.totalorder %s23, 0
        // Predicated region
        $region45: #{tpu_custom_call.1} parent=35 // pred_check
          %p249 = pneg %p248
        $region46: #{tpu_custom_call.1} parent=35 // pred_check_branch
          %251 = sbr.rel (%p249) target = $region48
        $region47: #{tpu_custom_call.1} parent=35 // pred_region
          %252 = vst [vmem:[#allocation2] sm:$0xff] 0.0
          %253 = vst [vmem:[#allocation2 + $0x8] sm:$0x3] 0.0
        $region48: #{tpu_custom_call.1} parent=35 // pred_fallthru
          _
        %v254 = vld [vmem:[#allocation2] sm:$0xff]
        %v255 = vld [vmem:[#allocation2 + $0x8] sm:$0x3]
        %v256 = vld [vmem:[%s211] sm:$0xff]
        %v257 = vld [vmem:[%s211 + $0x8] sm:$0xff]
        %v258 = vld [vmem:[%s211 + $0x10] sm:$0x11]
        %v259 = vld [vmem:[%s211 + $0x18] sm:$0x11]
        %v260 = vld [vmem:[%s220] sm:$0xf]
        %v261 = vld [vmem:[%s220 + $0x4] sm:$0xf]
        %v262 = vld [vmem:[%s220 + $0x8] sm:$0xf]
        %v263 = vld [vmem:[%s220 + $0xc] sm:$0xf]
        %v264 = vld [vmem:[%s220 + $0x10] sm:$0xf]
        %v265 = vld [vmem:[%s220 + $0x14] sm:$0xf]
        %v266 = vld [vmem:[%s220 + $0x18] sm:$0xf]
        %v267 = vld [vmem:[%s220 + $0x1c] sm:$0xf]
        %v268 = vld [vmem:[%s220 + $0x20] sm:$0xf]
        %v269 = vld [vmem:[%s220 + $0x24] sm:$0xf]
        %v270 = vld [vmem:[%s220 + $0x28] sm:$0xf]
        %v271 = vld [vmem:[%s220 + $0x2c] sm:$0xf]
        %v272 = vld [vmem:[%s220 + $0x30] sm:$0xf]
        %v273 = vld [vmem:[%s220 + $0x34] sm:$0xf]
        %v274 = vld [vmem:[%s220 + $0x38] sm:$0xf]
        %v275 = vld [vmem:[%s220 + $0x3c] sm:$0xf]
        %v276 = vld [vmem:[%s220 + $0x40] sm:$0xf]
        %v277 = vld [vmem:[%s220 + $0x44] sm:$0xf]
        %v278 = vld [vmem:[%s220 + $0x48] sm:$0xf]
        %v279 = vld [vmem:[%s220 + $0x4c] sm:$0xf]
        %v280 = vld [vmem:[%s220 + $0x50] sm:$0xf]
        %v281 = vld [vmem:[%s220 + $0x54] sm:$0xf]
        %v282 = vld [vmem:[%s220 + $0x58] sm:$0xf]
        %v283 = vld [vmem:[%s220 + $0x5c] sm:$0xf]
        %v284 = vld [vmem:[%s220 + $0x60] sm:$0xf]
        %v285 = vld [vmem:[%s220 + $0x64] sm:$0xf]
        %v286 = vld [vmem:[%s220 + $0x68] sm:$0xf]
        %v287 = vld [vmem:[%s220 + $0x6c] sm:$0xf]
        %v288 = vld [vmem:[%s220 + $0x70] sm:$0xf]
        %v289 = vld [vmem:[%s220 + $0x74] sm:$0xf]
        %v290 = vld [vmem:[%s220 + $0x78] sm:$0xf]
        %v291 = vld [vmem:[%s220 + $0x7c] sm:$0xf]
        %v292 = vld [vmem:[%s220 + $0x80] sm:$0xf]
        %v293 = vld [vmem:[%s220 + $0x84] sm:$0xf]
        %v294 = vld [vmem:[%s220 + $0x88] sm:$0xf]
        %v295 = vld [vmem:[%s220 + $0x8c] sm:$0xf]
        %v296 = vld [vmem:[%s220 + $0x90] sm:$0xf]
        %v297 = vld [vmem:[%s220 + $0x94] sm:$0xf]
        %v298 = vld [vmem:[%s220 + $0x98] sm:$0xf]
        %v299 = vld [vmem:[%s220 + $0x9c] sm:$0xf]
        %v300 = vld [vmem:[%s220 + $0xa0] sm:$0xf]
        %v301 = vld [vmem:[%s220 + $0xa4] sm:$0xf]
        %v302 = vld [vmem:[%s220 + $0xa8] sm:$0xf]
        %v303 = vld [vmem:[%s220 + $0xac] sm:$0xf]
        %v304 = vld [vmem:[%s220 + $0xb0] sm:$0xf]
        %v305 = vld [vmem:[%s220 + $0xb4] sm:$0xf]
        %v306 = vld [vmem:[%s220 + $0xb8] sm:$0xf]
        %v307 = vld [vmem:[%s220 + $0xbc] sm:$0xf]
        %v308 = vld [vmem:[%s220 + $0xc0] sm:$0xf]
        %v309 = vld [vmem:[%s220 + $0xc4] sm:$0xf]
        %v310 = vld [vmem:[%s220 + $0xc8] sm:$0xf]
        %v311 = vld [vmem:[%s220 + $0xcc] sm:$0xf]
        %v312 = vld [vmem:[%s220 + $0xd0] sm:$0xf]
        %v313 = vld [vmem:[%s220 + $0xd4] sm:$0xf]
        %v314 = vld [vmem:[%s220 + $0xd8] sm:$0xf]
        %v315 = vld [vmem:[%s220 + $0xdc] sm:$0xf]
        %v316 = vld [vmem:[%s220 + $0xe0] sm:$0xf]
        %v317 = vld [vmem:[%s220 + $0xe4] sm:$0xf]
        %v318 = vld [vmem:[%s220 + $0xe8] sm:$0xf]
        %v319 = vld [vmem:[%s220 + $0xec] sm:$0xf]
        %v320 = vld [vmem:[%s220 + $0xf0] sm:$0xf]
        %v321 = vld [vmem:[%s220 + $0xf4] sm:$0xf]
        %v322 = vld [vmem:[%s220 + $0xf8] sm:$0xf]
        %v323 = vld [vmem:[%s220 + $0xfc] sm:$0xf]
        %v328 = vunpack.c.l.b16 %v256
        %v329 = vunpack.c.h.b16 %v256
        %v330 = vunpack.c.l.b16 %v257
        %v331 = vunpack.c.h.b16 %v257
        %v332 = vunpack.c.l.b16 %v258
        %v333 = vunpack.c.h.b16 %v258
        %v334 = vunpack.c.l.b16 %v259
        %v335 = vunpack.c.h.b16 %v259
        %v336 = vpack.c.b16 %v332, %v328
        %v337 = vpack.c.b16 %v333, %v329
        %v338 = vpack.c.b16 %v334, %v330
        %v339 = vpack.c.b16 %v335, %v331
        %v408 = vunpack.c.l.b16 %v260
        %v409 = vunpack.c.l.b16 %v261
        %v410 = vunpack.c.l.b16 %v262
        %v411 = vunpack.c.l.b16 %v263
        %v412 = vunpack.c.l.b16 %v264
        %v413 = vunpack.c.l.b16 %v265
        %v414 = vunpack.c.l.b16 %v266
        %v415 = vunpack.c.l.b16 %v267
        %v416 = vunpack.c.l.b16 %v268
        %v417 = vunpack.c.l.b16 %v269
        %v418 = vunpack.c.l.b16 %v270
        %v419 = vunpack.c.l.b16 %v271
        %v420 = vunpack.c.l.b16 %v272
        %v421 = vunpack.c.l.b16 %v273
        %v422 = vunpack.c.l.b16 %v274
        %v423 = vunpack.c.l.b16 %v275
        %v424 = vunpack.c.l.b16 %v276
        %v425 = vunpack.c.l.b16 %v277
        %v426 = vunpack.c.l.b16 %v278
        %v427 = vunpack.c.l.b16 %v279
        %v428 = vunpack.c.l.b16 %v280
        %v429 = vunpack.c.l.b16 %v281
        %v430 = vunpack.c.l.b16 %v282
        %v431 = vunpack.c.l.b16 %v283
        %v432 = vunpack.c.l.b16 %v284
        %v433 = vunpack.c.l.b16 %v285
        %v434 = vunpack.c.l.b16 %v286
        %v435 = vunpack.c.l.b16 %v287
        %v436 = vunpack.c.l.b16 %v288
        %v437 = vunpack.c.l.b16 %v289
        %v438 = vunpack.c.l.b16 %v290
        %v439 = vunpack.c.l.b16 %v291
        %v440 = vunpack.c.l.b16 %v292
        %v441 = vunpack.c.l.b16 %v293
        %v442 = vunpack.c.l.b16 %v294
        %v443 = vunpack.c.l.b16 %v295
        %v444 = vunpack.c.l.b16 %v296
        %v445 = vunpack.c.l.b16 %v297
        %v446 = vunpack.c.l.b16 %v298
        %v447 = vunpack.c.l.b16 %v299
        %v448 = vunpack.c.l.b16 %v300
        %v449 = vunpack.c.l.b16 %v301
        %v450 = vunpack.c.l.b16 %v302
        %v451 = vunpack.c.l.b16 %v303
        %v452 = vunpack.c.l.b16 %v304
        %v453 = vunpack.c.l.b16 %v305
        %v454 = vunpack.c.l.b16 %v306
        %v455 = vunpack.c.l.b16 %v307
        %v456 = vunpack.c.l.b16 %v308
        %v457 = vunpack.c.l.b16 %v309
        %v458 = vunpack.c.l.b16 %v310
        %v459 = vunpack.c.l.b16 %v311
        %v460 = vunpack.c.l.b16 %v312
        %v461 = vunpack.c.l.b16 %v313
        %v462 = vunpack.c.l.b16 %v314
        %v463 = vunpack.c.l.b16 %v315
        %v464 = vunpack.c.l.b16 %v316
        %v465 = vunpack.c.l.b16 %v317
        %v466 = vunpack.c.l.b16 %v318
        %v467 = vunpack.c.l.b16 %v319
        %v468 = vunpack.c.l.b16 %v320
        %v469 = vunpack.c.l.b16 %v321
        %v470 = vunpack.c.l.b16 %v322
        %v471 = vunpack.c.l.b16 %v323
        %v472 = vpack.c.b16 %v409, %v408
        %v473 = vpack.c.b16 %v411, %v410
        %v474 = vpack.c.b16 %v413, %v412
        %v475 = vpack.c.b16 %v415, %v414
        %v476 = vpack.c.b16 %v417, %v416
        %v477 = vpack.c.b16 %v419, %v418
        %v478 = vpack.c.b16 %v421, %v420
        %v479 = vpack.c.b16 %v423, %v422
        %v480 = vpack.c.b16 %v425, %v424
        %v481 = vpack.c.b16 %v427, %v426
        %v482 = vpack.c.b16 %v429, %v428
        %v483 = vpack.c.b16 %v431, %v430
        %v484 = vpack.c.b16 %v433, %v432
        %v485 = vpack.c.b16 %v435, %v434
        %v486 = vpack.c.b16 %v437, %v436
        %v487 = vpack.c.b16 %v439, %v438
        %v488 = vpack.c.b16 %v441, %v440
        %v489 = vpack.c.b16 %v443, %v442
        %v490 = vpack.c.b16 %v445, %v444
        %v491 = vpack.c.b16 %v447, %v446
        %v492 = vpack.c.b16 %v449, %v448
        %v493 = vpack.c.b16 %v451, %v450
        %v494 = vpack.c.b16 %v453, %v452
        %v495 = vpack.c.b16 %v455, %v454
        %v496 = vpack.c.b16 %v457, %v456
        %v497 = vpack.c.b16 %v459, %v458
        %v498 = vpack.c.b16 %v461, %v460
        %v499 = vpack.c.b16 %v463, %v462
        %v500 = vpack.c.b16 %v465, %v464
        %v501 = vpack.c.b16 %v467, %v466
        %v502 = vpack.c.b16 %v469, %v468
        %v503 = vpack.c.b16 %v471, %v470
        %536 = vmatprep.subr.bf16.mxu0 0
        %537 = vmatpush1.bf16.msra.mxu0 %v472
        %538 = vmatprep.subr.bf16.mxu0 0
        %539 = vmatpush1.bf16.msra.mxu0 %v473
        %540 = vmatprep.subr.bf16.mxu0 0
        %541 = vmatpush1.bf16.msra.mxu0 %v474
        %542 = vmatprep.subr.bf16.mxu0 0
        %543 = vmatpush1.bf16.msra.mxu0 %v475
        %544 = vmatprep.subr.bf16.mxu0 0
        %545 = vmatpush1.bf16.msra.mxu0 %v476
        %546 = vmatprep.subr.bf16.mxu0 0
        %547 = vmatpush1.bf16.msra.mxu0 %v477
        %548 = vmatprep.subr.bf16.mxu0 0
        %549 = vmatpush1.bf16.msra.mxu0 %v478
        %550 = vmatprep.subr.bf16.mxu0 0
        %551 = vmatpush1.bf16.msra.mxu0 %v479
        %552 = vmatprep.subr.bf16.mxu0 0
        %553 = vmatpush1.bf16.msra.mxu0 %v480
        %554 = vmatprep.subr.bf16.mxu0 0
        %555 = vmatpush1.bf16.msra.mxu0 %v481
        %556 = vmatprep.subr.bf16.mxu0 0
        %557 = vmatpush1.bf16.msra.mxu0 %v482
        %558 = vmatprep.subr.bf16.mxu0 0
        %559 = vmatpush1.bf16.msra.mxu0 %v483
        %560 = vmatprep.subr.bf16.mxu0 0
        %561 = vmatpush1.bf16.msra.mxu0 %v484
        %562 = vmatprep.subr.bf16.mxu0 0
        %563 = vmatpush1.bf16.msra.mxu0 %v485
        %564 = vmatprep.subr.bf16.mxu0 0
        %565 = vmatpush1.bf16.msra.mxu0 %v486
        %566 = vmatprep.subr.bf16.mxu0 0
        %567 = vmatpush1.bf16.msra.mxu0 %v487
        %568 = vmatprep.mubr.bf16.mxu0 %v337
        %569 = vmatmul.mubr.bf16.gmra.mrb[0].mxu0 %v336
        %v570 = vpop.f32.mrb[0].mxu0
        %v571 = vadd.f32 0.0, %v570
        %v572 = vpop.f32.mrb[0].mxu0
        %v573 = vpop.f32.mrb[0].mxu0
        %v574 = vadd.f32 0.0, %v573
        %v575 = vpop.f32.mrb[0].mxu0
        %576 = vdwg.mxu0
        %577 = vmatprep.subr.bf16.mxu0 0
        %578 = vmatpush1.bf16.msra.mxu0 %v488
        %579 = vmatprep.subr.bf16.mxu0 0
        %580 = vmatpush1.bf16.msra.mxu0 %v489
        %581 = vmatprep.subr.bf16.mxu0 0
        %582 = vmatpush1.bf16.msra.mxu0 %v490
        %583 = vmatprep.subr.bf16.mxu0 0
        %584 = vmatpush1.bf16.msra.mxu0 %v491
        %585 = vmatprep.subr.bf16.mxu0 0
        %586 = vmatpush1.bf16.msra.mxu0 %v492
        %587 = vmatprep.subr.bf16.mxu0 0
        %588 = vmatpush1.bf16.msra.mxu0 %v493
        %589 = vmatprep.subr.bf16.mxu0 0
        %590 = vmatpush1.bf16.msra.mxu0 %v494
        %591 = vmatprep.subr.bf16.mxu0 0
        %592 = vmatpush1.bf16.msra.mxu0 %v495
        %593 = vmatprep.subr.bf16.mxu0 0
        %594 = vmatpush1.bf16.msra.mxu0 %v496
        %595 = vmatprep.subr.bf16.mxu0 0
        %596 = vmatpush1.bf16.msra.mxu0 %v497
        %597 = vmatprep.subr.bf16.mxu0 0
        %598 = vmatpush1.bf16.msra.mxu0 %v498
        %599 = vmatprep.subr.bf16.mxu0 0
        %600 = vmatpush1.bf16.msra.mxu0 %v499
        %601 = vmatprep.subr.bf16.mxu0 0
        %602 = vmatpush1.bf16.msra.mxu0 %v500
        %603 = vmatprep.subr.bf16.mxu0 0
        %604 = vmatpush1.bf16.msra.mxu0 %v501
        %605 = vmatprep.subr.bf16.mxu0 0
        %606 = vmatpush1.bf16.msra.mxu0 %v502
        %607 = vmatprep.subr.bf16.mxu0 0
        %608 = vmatpush1.bf16.msra.mxu0 %v503
        %609 = vmatprep.mubr.bf16.mxu0 %v339
        %610 = vmatmul.mubr.bf16.gmra.mrb[0].mxu0 %v338
        %v611 = vpop.f32.mrb[0].mxu0
        %v612 = vadd.f32 %v571, %v611
        %v613 = vpop.f32.mrb[0].mxu0
        %v614 = vpop.f32.mrb[0].mxu0
        %v615 = vadd.f32 %v574, %v614
        %v616 = vpop.f32.mrb[0].mxu0
        %617 = vdwg.mxu0
        %v618 = vadd.f32 %v254, %v612
        %v619 = vadd.f32 %v255, %v615
        %620 = vst [vmem:[#allocation2] sm:$0xff] %v618
        %621 = vst [vmem:[#allocation2 + $0x8] sm:$0x3] %v619
        %p622 = scmp.eq.s32.totalorder %s23, 1
        // Predicated region
        $region49: #{tpu_custom_call.1} parent=35 // pred_check
          %p623 = pneg %p622
        $region50: #{tpu_custom_call.1} parent=35 // pred_check_branch
          %625 = sbr.rel (%p623) target = $region52
        $region51: #{tpu_custom_call.1} parent=35 // pred_region
          %v626 = vld [vmem:[%s2] sm:$0x1]
          %s627 = sld [smem:[#allocation3]]
          %v628 = vld [vmem:[#allocation2] sm:$0x3]
          %v630 = vlaneseq
          %v631 = vshrl.u32 %v630, 7
          %v632 = vsub.s32 0, %v631
          %v633 = vrot.slane %v626, %v632
          %v635 = vadd.f32 %v628, %v633
          %v636 = vmul.f32 %v635, %v635
          %vm637 = vcmask 1041408
          %v638 = vsel %vm637, %v636, 0.0
          %639 = vadd.xlane.f32.xlu0 %v638
          %v640 = vpop.xlane.xlu0 %639
          %v641 = vmax.f32 %v640, 1e-16
          %v642 = vrsqrt.pop %v641
          %v643 = vld [vmem:[#allocation2 + $0x2] sm:$0x3]
          %v644 = vadd.f32 %v643, %v633
          %v645 = vmul.f32 %v635, %v644
          %v646 = vsel %vm637, %v645, 0.0
          %647 = vadd.xlane.f32.xlu0 %v646
          %v648 = vpop.xlane.xlu0 %647
          %v649 = vmul.f32 %v644, %v644
          %v650 = vsel %vm637, %v649, 0.0
          %651 = vadd.xlane.f32.xlu0 %v650
          %v652 = vpop.xlane.xlu0 %651
          %v653 = vmax.f32 %v652, 1e-16
          %v654 = vrsqrt.pop %v653
          %v655 = vmul.f32 %v648, %v642
          %v656 = vmul.f32 %v655, %v654
          %v657 = vld [vmem:[#allocation2 + $0x4] sm:$0x3]
          %v658 = vadd.f32 %v657, %v633
          %v659 = vmul.f32 %v635, %v658
          %v660 = vsel %vm637, %v659, 0.0
          %661 = vadd.xlane.f32.xlu0 %v660
          %v662 = vpop.xlane.xlu0 %661
          %v663 = vmul.f32 %v658, %v658
          %v664 = vsel %vm637, %v663, 0.0
          %665 = vadd.xlane.f32.xlu0 %v664
          %v666 = vpop.xlane.xlu0 %665
          %v667 = vmax.f32 %v666, 1e-16
          %v668 = vrsqrt.pop %v667
          %v669 = vmul.f32 %v662, %v642
          %v670 = vmul.f32 %v669, %v668
          %v671 = vld [vmem:[#allocation2 + $0x6] sm:$0x3]
          %v672 = vadd.f32 %v671, %v633
          %v673 = vmul.f32 %v635, %v672
          %v674 = vsel %vm637, %v673, 0.0
          %675 = vadd.xlane.f32.xlu0 %v674
          %v676 = vpop.xlane.xlu0 %675
          %v677 = vmul.f32 %v672, %v672
          %v678 = vsel %vm637, %v677, 0.0
          %679 = vadd.xlane.f32.xlu0 %v678
          %v680 = vpop.xlane.xlu0 %679
          %v681 = vmax.f32 %v680, 1e-16
          %v682 = vrsqrt.pop %v681
          %v683 = vmul.f32 %v676, %v642
          %v684 = vmul.f32 %v683, %v682
          %v685 = vld [vmem:[#allocation2 + $0x8] sm:$0x3]
          %v686 = vadd.f32 %v685, %v633
          %v687 = vmul.f32 %v635, %v686
          %v688 = vsel %vm637, %v687, 0.0
          %689 = vadd.xlane.f32.xlu0 %v688
          %v690 = vpop.xlane.xlu0 %689
          %v691 = vmul.f32 %v686, %v686
          %v692 = vsel %vm637, %v691, 0.0
          %693 = vadd.xlane.f32.xlu0 %v692
          %v694 = vpop.xlane.xlu0 %693
          %v695 = vmax.f32 %v694, 1e-16
          %v696 = vrsqrt.pop %v695
          %v697 = vmul.f32 %v690, %v642
          %v698 = vmul.f32 %v697, %v696
          %vm699 = vcmask 7168
          %v700 = vsel %vm699, %v656, %v670
          %vm701 = vcmask 15360
          %v702 = vsel %vm701, %v700, %v684
          %vm703 = vcmask 23552
          %v704 = vsel %vm703, %v702, %v698
          %v705 = vstv %s627
          %v706 = vmul.f32 %v704, %v705
          %vm707 = vcmask 25600
          %708 = vst.msk [vmem:[#allocation9] sm:$0x3] %vm707, %v706
        $region52: #{tpu_custom_call.1} parent=35 // pred_fallthru
          _
        // Predicated region
        $region53: #{tpu_custom_call.1} parent=35 // pred_check
          %p709 = pneg %p130
        $region54: #{tpu_custom_call.1} parent=35 // pred_check_branch
          %711 = sbr.rel (%p709) target = $region56
        $region55: #{tpu_custom_call.1} parent=35 // pred_region
          %s713 = ssub.s32 32, 32
          %714 = vsyncadd [#allocation6], %s713
          %s716 = sshll.u32 [#allocation9], 4
          %s717 = int_to_ptr.vmem [resolvable:$true] %s716
          %719 = dma.vmem_to_hbm [thread:$0]  %s717, 32, %s4, [#allocation6]
        $region56: #{tpu_custom_call.1} parent=35 // pred_fallthru
          _
        // Predicated region
        $region57: #{tpu_custom_call.1} parent=35 // pred_check
          %p720 = pneg %p130
        $region58: #{tpu_custom_call.1} parent=35 // pred_check_branch
          %722 = sbr.rel (%p720) target = $region60
        $region59: #{tpu_custom_call.1} parent=35 // pred_region
          %723 = dma.done [#allocation6], 32
        $region60: #{tpu_custom_call.1} parent=35 // pred_fallthru
          _
      $region36: #{tpu_custom_call.1} parent=5 // pred_fallthru
        _
      %p724 = scmp.le.s32.totalorder 2, %s18
      // Predicated region
      $region61: #{tpu_custom_call.1} parent=5 // pred_check
        %p725 = pneg %p724
      $region62: #{tpu_custom_call.1} parent=5 // pred_check_branch
        %727 = sbr.rel (%p725) target = $region64
      $region63: #{tpu_custom_call.1} parent=5 // pred_region
        %s728 = ssub.s32 %s18, 2
      $region64: #{tpu_custom_call.1} parent=5 // pred_fallthru
        _
    $region6: #{tpu_custom_call.1} parent=1 // loop_footer
      %s22 = sadd.s32 1, %s18
    $region7: #{tpu_custom_call.1} parent=1 // loop_footer_branch
      %17 = sbr.rel target = $region3
    $region8: #{tpu_custom_call.1} parent=1 // loop_exit
      _
    %729 = vsyncpa [#allocation5], 1
    %s730 = scalar_lea.sflag [#allocation5], 1
    %731 = vsyncpa %s730, 1
    %732 = vsyncpa [#allocation8], 1
    %s733 = scalar_lea.sflag [#allocation8], 1
    %734 = vsyncpa %s733, 1
    %735 = vsyncpa [#allocation6], 1
    %s736 = scalar_lea.sflag [#allocation6], 1
    %737 = vsyncpa %s736, 1

</llo_original>
